<compile_context>
chip_gen: v5e
topology: v5e:2x2
jax: 0.10.0
libtpu: 0.0.40
codegen_flags: <defaults>
</compile_context>

<pallas_src>
import jax
import jax.numpy as jnp
from jax.experimental import pallas as pl
from jax.experimental.pallas import tpu as pltpu


# ---------------------------------------------------------------------------
# Tiling / VMEM budgeting helpers
# ---------------------------------------------------------------------------

_VMEM_BUDGET = 32 * 1024 * 1024        # buffer budget; safe on every generation
_TARGET_STEP_BYTES = 4 * 1024 * 1024   # aim for ~4 MiB of HBM payload per grid step
_MAX_BATCH_BLOCK = 8                   # kernel unrolls a static loop over TB


def _round_up(x, m):
    return -(-x // m) * m


def _tile_vmem(rows, cols, itemsize):
    """VMEM bytes of one 2-D tile after (sublane, lane) padding."""
    return _round_up(max(rows, 1), 8) * _round_up(max(cols, 1), 128) * itemsize


def _vmem_bytes(tb, tn, d_in, h, in_isz, out_isz, channels_first,
                x_bufs=2, out_bufs=2):
    """Double-buffered VMEM footprint of one grid step (with layout padding)."""
    if channels_first:
        x_tile = _tile_vmem(d_in, tn, in_isz)   # (d_in, tn): lane-dense in n
    else:
        x_tile = _tile_vmem(tn, d_in, in_isz)   # (tn, d_in): d_in pads to 128 lanes
    o_tile = _tile_vmem(h, tn, out_isz)
    w_tile = _tile_vmem(h, d_in, 4)
    b_tile = _tile_vmem(h, 1, 4)
    return x_bufs * tb * x_tile + out_bufs * tb * o_tile + 2 * (w_tile + b_tile)


def _choose_tiles(b_s, n, d_in, h, in_isz, out_isz, channels_first):
    """Pick (TB, tn): lane-dense tile along n plus a batch block.

    tn is either the full n (always a legal block) or a multiple of 128, so
    blocks are legal under the (8, 128) rule; the grid uses cdiv and Pallas
    masks the ragged last block (no full-n VMEM-exploding fallback).
    """
    max_tn = 16384 if channels_first else 8192
    if n > max_tn:
        tn = max_tn
    elif n >= 1024 and b_s < 4:
        # Split n into a handful of steps so the pipeline has work to overlap.
        tn = max(512, _round_up(pl.cdiv(n, 4), 128))
    else:
        tn = n
    # Shrink tn if a single (TB=1) step would already blow the VMEM budget.
    while tn > 256 and _vmem_bytes(1, tn, d_in, h, in_isz, out_isz,
                                   channels_first) > _VMEM_BUDGET:
        tn = max(256, _round_up(tn // 2, 128))

    # Grow the batch block until each step moves a few MiB of HBM traffic.
    def step_bytes(tb_):
        return tb_ * min(tn, n) * (d_in * in_isz + h * out_isz)

    tb = 1
    tb_cap = min(b_s, _MAX_BATCH_BLOCK)
    while tb < tb_cap and step_bytes(tb) < _TARGET_STEP_BYTES:
        nxt = min(tb * 2, tb_cap)
        if _vmem_bytes(nxt, tn, d_in, h, in_isz, out_isz,
                       channels_first) > _VMEM_BUDGET:
            break
        tb = nxt
    return tb, tn


# ---------------------------------------------------------------------------
# Kernels
# ---------------------------------------------------------------------------

def _dist_ff_nd_kernel(x_ref, w_ref, b_ref, o_ref):
    # x_ref: (TB, TN, d_in) node-major input tile
    # w_ref: (h, d_in)      full weight, resident across the grid
    # b_ref: (h, 1)         bias column, broadcasts over the lane (TN) axis
    # o_ref: (TB, h, TN)    lane-dense output slab (channels x nodes)
    w = w_ref[...]
    b = b_ref[...]
    for b_idx in range(o_ref.shape[0]):        # static, short unrolled loop
        acc = jax.lax.dot_general(
            w, x_ref[b_idx],
            dimension_numbers=(((1,), (1,)), ((), ())),   # contract d_in
            preferred_element_type=jnp.float32)           # (h, TN) in f32
        o_ref[b_idx] = (acc + b).astype(o_ref.dtype)


def _dist_ff_dn_kernel(x_ref, w_ref, b_ref, o_ref):
    # x_ref: (TB, d_in, TN) channels-first input tile (canonical MXU orientation,
    #        no lane padding of the streamed operand)
    w = w_ref[...]
    b = b_ref[...]
    for b_idx in range(o_ref.shape[0]):
        acc = jax.lax.dot_general(
            w, x_ref[b_idx],
            dimension_numbers=(((1,), (0,)), ((), ())),   # (h,d_in) x (d_in,TN)
            preferred_element_type=jnp.float32)
        o_ref[b_idx] = (acc + b).astype(o_ref.dtype)


# ---------------------------------------------------------------------------
# Wrapper
# ---------------------------------------------------------------------------

def dist_ff_pallas(node_topo, weight, bias, *, channels_first=False,
                   out_dtype=None):
    """Linear(d_in -> h) over the node axis, emitted channels-major.

    node_topo: (b_s, n, d_in)  [default]  or  (b_s, d_in, n) if channels_first.
    weight: (h, d_in), bias: (h,).
    Returns (b_s, h, n) == transpose(node_topo @ W.T + b, (0, 2, 1)).
    """
    if channels_first:
        b_s, d_in, n = node_topo.shape
    else:
        b_s, n, d_in = node_topo.shape
    h = weight.shape[0]
    if out_dtype is None:
        out_dtype = node_topo.dtype
    in_isz = jnp.dtype(node_topo.dtype).itemsize
    out_isz = jnp.dtype(out_dtype).itemsize

    tb, tn = _choose_tiles(b_s, n, d_in, h, in_isz, out_isz, channels_first)
    grid = (pl.cdiv(b_s, tb), pl.cdiv(n, tn))

    if channels_first:
        kernel = _dist_ff_dn_kernel
        x_spec = pl.BlockSpec((tb, d_in, tn), lambda bi, ti: (bi, 0, ti))
    else:
        kernel = _dist_ff_nd_kernel
        x_spec = pl.BlockSpec((tb, tn, d_in), lambda bi, ti: (bi, ti, 0))

    b_col = bias.reshape(h, 1)

    vmem_need = _vmem_bytes(tb, tn, d_in, h, in_isz, out_isz, channels_first)
    vmem_limit = int(min(vmem_need + (8 << 20), 64 << 20))

    cost = pl.CostEstimate(
        flops=2 * b_s * n * d_in * h,
        transcendentals=0,
        bytes_accessed=(b_s * n * d_in * in_isz
                        + b_s * h * n * out_isz
                        + (h * d_in + h) * 4),
    )

    return pl.pallas_call(
        kernel,
        out_shape=jax.ShapeDtypeStruct((b_s, h, n), out_dtype),
        grid_spec=pl.GridSpec(
            grid=grid,
            in_specs=[
                x_spec,                                           # streamed x tile
                pl.BlockSpec((h, d_in), lambda bi, ti: (0, 0)),   # W resident
                pl.BlockSpec((h, 1), lambda bi, ti: (0, 0)),      # bias resident
            ],
            out_specs=pl.BlockSpec((tb, h, tn), lambda bi, ti: (bi, 0, ti)),
        ),
        compiler_params=pltpu.CompilerParams(
            dimension_semantics=("parallel", "parallel"),
            vmem_limit_bytes=vmem_limit),
        cost_estimate=cost,
    )(node_topo, weight, b_col)


# ---------------------------------------------------------------------------
# Module port (dense projection only)
# ---------------------------------------------------------------------------

class DistanceBasedPositionGenModulePallas:
    """JAX/Pallas port of the dense projection. Only dist_ff (Linear(d_in, h))
    has parameters used in forward; d_model / dropout / N_enc are stored but
    unused in forward. Output dtype stays f32 to match the PyTorch module;
    pass out_dtype=jnp.bfloat16 to dist_ff_pallas if downstream tolerates it."""

    def __init__(self, d_in, d_model, h, dropout, N_enc, key):
        self.h = h
        self.d_model = d_model
        self.nlayers = N_enc
        kw, kb = jax.random.split(key)
        bound = 1.0 / (d_in ** 0.5)   # nn.Linear-style uniform init
        self.weight = jax.random.uniform(kw, (h, d_in), jnp.float32,
                                         minval=-bound, maxval=bound)
        self.bias = jax.random.uniform(kb, (h,), jnp.float32,
                                       minval=-bound, maxval=bound)

    def forward(self, x, node_topo, Ahat):
        # Linear + permute fused in the kernel -> (b_s, h, n); trailing
        # unsqueeze is metadata-only (no HBM traffic).
        out = dist_ff_pallas(node_topo, self.weight, self.bias)  # (b_s, h, n)
        return out[..., None]                                    # (b_s, h, n, 1)


def _reference_forward(x, node_topo, Ahat, weight, bias):
    nt = node_topo @ weight.T + bias          # (b_s, n, h)
    out = nt[..., None]                       # (b_s, n, h, 1)
    return jnp.transpose(out, (0, 2, 1, 3))   # (b_s, h, n, 1)


def _reference_hn(node_topo, weight, bias):
    return jnp.transpose(node_topo @ weight.T + bias, (0, 2, 1))  # (b_s, h, n)


if __name__ == "__main__":
    key = jax.random.PRNGKey(0)
    k_mod, k_x, k_topo, k_a, k_t2, k_t3 = jax.random.split(key, 6)

    # --- 1) Module-consistent small shapes ---------------------------------
    b_s, n = 2, 16
    d_in, d_model, h = 8, 32, 32
    N_enc, dropout = 2, 0.1

    module = DistanceBasedPositionGenModulePallas(d_in, d_model, h, dropout,
                                                  N_enc, k_mod)

    x = jax.random.normal(k_x, (b_s, n, d_model), jnp.float32)
    node_topo = jax.random.normal(k_topo, (b_s, n, d_in), jnp.float32)
    Ahat = jax.random.normal(k_a, (b_s, n, n), jnp.float32)  # unused in forward

    out = jax.block_until_ready(module.forward(x, node_topo, Ahat))
    ref = _reference_forward(x, node_topo, Ahat, module.weight, module.bias)
    assert out.shape == (b_s, h, n, 1), out.shape
    assert jnp.allclose(out, ref, atol=1e-5, rtol=1e-5), "mismatch (module path)"

    # --- 2) Tiled grid with ragged last tile (n multiple of 128) -----------
    nt2 = jax.random.normal(k_t2, (2, 2176, d_in), jnp.float32)
    o2 = jax.block_until_ready(dist_ff_pallas(nt2, module.weight, module.bias))
    assert jnp.allclose(o2, _reference_hn(nt2, module.weight, module.bias),
                        atol=1e-4, rtol=1e-4), "mismatch (ragged tiled path)"

    # --- 2b) Ragged last tile with n NOT a multiple of 128 ------------------
    nt2b = jax.random.normal(k_t2, (2, 1100, d_in), jnp.float32)
    o2b = jax.block_until_ready(dist_ff_pallas(nt2b, module.weight, module.bias))
    assert jnp.allclose(o2b, _reference_hn(nt2b, module.weight, module.bias),
                        atol=1e-4, rtol=1e-4), "mismatch (non-128 ragged path)"

    # --- 3) Batch-blocked path (small n, larger b_s) ------------------------
    nt3 = jax.random.normal(k_t3, (8, 640, d_in), jnp.float32)
    r3 = _reference_hn(nt3, module.weight, module.bias)
    o3 = jax.block_until_ready(dist_ff_pallas(nt3, module.weight, module.bias))
    assert jnp.allclose(o3, r3, atol=1e-4, rtol=1e-4), "mismatch (batch-blocked)"

    # --- 3b) Channels-first fast path (producer emits (b_s, d_in, n)) -------
    nt3_cf = jnp.transpose(nt3, (0, 2, 1))
    o3_cf = jax.block_until_ready(
        dist_ff_pallas(nt3_cf, module.weight, module.bias, channels_first=True))
    assert jnp.allclose(o3_cf, r3, atol=1e-4, rtol=1e-4), "mismatch (channels-first)"

    # --- 4) bf16 output (halves the dominant writeback traffic) -------------
    o_bf16 = jax.block_until_ready(
        dist_ff_pallas(nt3, module.weight, module.bias, out_dtype=jnp.bfloat16))
    assert jnp.allclose(o_bf16.astype(jnp.float32), r3, atol=3e-2, rtol=3e-2), \
        "mismatch (bf16 output)"

    print("KERNEL_OK")
</pallas_src>

<mosaic_0001>
module attributes {stable_mosaic.version = 11 : i64} {
  func.func @_dist_ff_nd_kernel(%arg0: i32, %arg1: i32, %arg2: memref<2x16x8xf32, #tpu.memory_space<vmem>>, %arg3: memref<32x8xf32, #tpu.memory_space<vmem>>, %arg4: memref<32x1xf32, #tpu.memory_space<vmem>>, %arg5: memref<2x32x16xf32, #tpu.memory_space<vmem>>) attributes {dimension_semantics = [#tpu.dimension_semantics<parallel>, #tpu.dimension_semantics<parallel>], iteration_bounds = array<i64: 1, 1>, scalar_prefetch = 0 : i64, scratch_operands = 0 : i64, tpu.core_type = #tpu.core_type<tc>, window_params = [{transform_indices = @transform_0, window_bounds = array<i64: 2, 16, 8>}, {pipeline_mode = #tpu.pipeline_mode<synchronous>, transform_indices = @transform_1, window_bounds = array<i64: 32, 8>}, {pipeline_mode = #tpu.pipeline_mode<synchronous>, transform_indices = @transform_2, window_bounds = array<i64: 32, 1>}, {transform_indices = @transform_3, window_bounds = array<i64: 2, 32, 16>}]} {
    %c0 = arith.constant 0 : index
    %c0_0 = arith.constant 0 : index
    %0 = vector.load %arg3[%c0, %c0_0] : memref<32x8xf32, #tpu.memory_space<vmem>>, vector<32x8xf32>
    %c0_1 = arith.constant 0 : index
    %c0_2 = arith.constant 0 : index
    %1 = vector.load %arg4[%c0_1, %c0_2] : memref<32x1xf32, #tpu.memory_space<vmem>>, vector<32x1xf32>
    %c0_3 = arith.constant 0 : index
    %c0_4 = arith.constant 0 : index
    %c0_5 = arith.constant 0 : index
    %2 = vector.load %arg2[%c0_3, %c0_4, %c0_5] : memref<2x16x8xf32, #tpu.memory_space<vmem>>, vector<1x16x8xf32>
    %3 = vector.shape_cast %2 : vector<1x16x8xf32> to vector<16x8xf32>
    %cst = arith.constant dense<0.000000e+00> : vector<32x16xf32>
    %4 = tpu.matmul %0, %3, %cst {dimension_numbers = #tpu.dot_dimension_numbers<[1], [1], [0], [0], [0, 0, 1, 0], [], []>} : vector<32x8xf32>, vector<16x8xf32>, vector<32x16xf32> -> vector<32x16xf32>
    %5 = vector.broadcast %1 : vector<32x1xf32> to vector<32x16xf32>
    %6 = arith.addf %4, %5 : vector<32x16xf32>
    %c0_6 = arith.constant 0 : index
    %c0_7 = arith.constant 0 : index
    %c0_8 = arith.constant 0 : index
    %7 = vector.load %arg5[%c0_6, %c0_7, %c0_8] : memref<2x32x16xf32, #tpu.memory_space<vmem>>, vector<1x32x16xf32>
    %8 = vector.shape_cast %7 : vector<1x32x16xf32> to vector<32x16xf32>
    %9 = vector.shape_cast %6 : vector<32x16xf32> to vector<1x32x16xf32>
    tpu.vector_store %arg5[%c0_6, %c0_7, %c0_8], %9 {strides = array<i32>} : memref<2x32x16xf32, #tpu.memory_space<vmem>>, vector<1x32x16xf32>,
    %c1 = arith.constant 1 : index
    %c0_9 = arith.constant 0 : index
    %c0_10 = arith.constant 0 : index
    %10 = vector.load %arg2[%c1, %c0_9, %c0_10] : memref<2x16x8xf32, #tpu.memory_space<vmem>>, vector<1x16x8xf32>
    %11 = vector.shape_cast %10 : vector<1x16x8xf32> to vector<16x8xf32>
    %cst_11 = arith.constant dense<0.000000e+00> : vector<32x16xf32>
    %12 = tpu.matmul %0, %11, %cst_11 {dimension_numbers = #tpu.dot_dimension_numbers<[1], [1], [0], [0], [0, 0, 1, 0], [], []>} : vector<32x8xf32>, vector<16x8xf32>, vector<32x16xf32> -> vector<32x16xf32>
    %13 = vector.broadcast %1 : vector<32x1xf32> to vector<32x16xf32>
    %14 = arith.addf %12, %13 : vector<32x16xf32>
    %c1_12 = arith.constant 1 : index
    %c0_13 = arith.constant 0 : index
    %c0_14 = arith.constant 0 : index
    %15 = vector.load %arg5[%c1_12, %c0_13, %c0_14] : memref<2x32x16xf32, #tpu.memory_space<vmem>>, vector<1x32x16xf32>
    %16 = vector.shape_cast %15 : vector<1x32x16xf32> to vector<32x16xf32>
    %17 = vector.shape_cast %14 : vector<32x16xf32> to vector<1x32x16xf32>
    tpu.vector_store %arg5[%c1_12, %c0_13, %c0_14], %17 {strides = array<i32>} : memref<2x32x16xf32, #tpu.memory_space<vmem>>, vector<1x32x16xf32>,
    return
  }
  func.func @transform_0(%arg0: i32, %arg1: i32) -> (i32, i32, i32) {
    %c0_i32 = arith.constant 0 : i32
    %c0_i32_0 = arith.constant 0 : i32
    return %arg0, %arg1, %c0_i32 : i32, i32, i32
  }
  func.func @transform_1(%arg0: i32, %arg1: i32) -> (i32, i32) {
    %c0_i32 = arith.constant 0 : i32
    %c0_i32_0 = arith.constant 0 : i32
    %c0_i32_1 = arith.constant 0 : i32
    return %c0_i32, %c0_i32_0 : i32, i32
  }
  func.func @transform_2(%arg0: i32, %arg1: i32) -> (i32, i32) {
    %c0_i32 = arith.constant 0 : i32
    %c0_i32_0 = arith.constant 0 : i32
    %c0_i32_1 = arith.constant 0 : i32
    return %c0_i32, %c0_i32_0 : i32, i32
  }
  func.func @transform_3(%arg0: i32, %arg1: i32) -> (i32, i32, i32) {
    %c0_i32 = arith.constant 0 : i32
    %c0_i32_0 = arith.constant 0 : i32
    return %arg0, %c0_i32, %arg1 : i32, i32, i32
  }
}

</mosaic_0001>

<llo_original>
// kernel: tpu_custom_call.1
$region0: #{tpu_custom_call.1}
  #allocation0 [shape = 'u32[]', space=smem, size = 0x4, offset = 0x4, fixed_abs, tag = 'smem constant byte address 0x4 - core index']
  #allocation1 [shape = 'u32[72,128]{1,0:T(1,128)}', space=vmem, size = 0x9000, scoped, tag = 'internal scratch']
  %s0 = inlined_call_operand.vmem [shape: f32[2,16,8], index: 0, kind: input, shape index: {}]
  %s1 = inlined_call_operand.vmem [shape: f32[32,8], index: 1, kind: input, shape index: {}]
  %s2 = inlined_call_operand.vmem [shape: f32[32,1], index: 2, kind: input, shape index: {}]
  %s3 = inlined_call_operand.vmem [shape: f32[2,32,16], index: 3, kind: output, shape index: {}]
  %s4 = sld [smem:[#allocation0]]
  $region22: #{tpu_custom_call.1} parent=0
    _
  %s6 = ssub.s32 1, %s4
  %s7 = scalar_select 0, %s6, %s4
  // Predicated region
  $region2: #{tpu_custom_call.1} parent=0 // pred_check
    _
  $region3: #{tpu_custom_call.1} parent=0 // pred_check_branch
    %9 = sbr.rel (0) target = $region5
  $region4: #{tpu_custom_call.1} parent=0 // pred_region
    _
  $region5: #{tpu_custom_call.1} parent=0 // pred_fallthru
    _
  // Predicated region
  $region6: #{tpu_custom_call.1} parent=0 // pred_check
    _
  $region7: #{tpu_custom_call.1} parent=0 // pred_check_branch
    %11 = sbr.rel (0) target = $region9
  $region8: #{tpu_custom_call.1} parent=0 // pred_region
    _
  $region9: #{tpu_custom_call.1} parent=0 // pred_fallthru
    _
  // Predicated region
  $region10: #{tpu_custom_call.1} parent=0 // pred_check
    _
  $region11: #{tpu_custom_call.1} parent=0 // pred_check_branch
    %13 = sbr.rel (0) target = $region13
  $region12: #{tpu_custom_call.1} parent=0 // pred_region
    _
  $region13: #{tpu_custom_call.1} parent=0 // pred_fallthru
    _
  %v14 = vld [vmem:[%s1] sm:$0xff]
  %v15 = vld [vmem:[%s1 + $0x8] sm:$0xff]
  %v16 = vld [vmem:[%s1 + $0x10] sm:$0xff]
  %v17 = vld [vmem:[%s1 + $0x18] sm:$0xff]
  %v18 = vld [vmem:[%s2] sm:$0xff]
  %v19 = vld [vmem:[%s2 + $0x8] sm:$0xff]
  %v20 = vld [vmem:[%s2 + $0x10] sm:$0xff]
  %v21 = vld [vmem:[%s2 + $0x18] sm:$0xff]
  %v22 = vld [vmem:[%s0] sm:$0xff]
  %v23 = vld [vmem:[%s0 + $0x8] sm:$0xff]
  %25 = vset.pattern.permute.xlu0 0
  %26 = vperm.xlu0 %25, %v18
  %v27 = vpop.permute.xlu0 %26
  %30 = vset.pattern.permute.xlu0 0
  %31 = vperm.xlu0 %30, %v19
  %v32 = vpop.permute.xlu0 %31
  %35 = vset.pattern.permute.xlu0 0
  %36 = vperm.xlu0 %35, %v20
  %v37 = vpop.permute.xlu0 %36
  %40 = vset.pattern.permute.xlu0 0
  %41 = vperm.xlu0 %40, %v21
  %v42 = vpop.permute.xlu0 %41
  %vm44 = vcmask 64512
  %v46 = vsel %vm44, %v14, 0
  %v49 = vsel %vm44, %v15, 0
  %v52 = vsel %vm44, %v16, 0
  %v55 = vsel %vm44, %v17, 0
  %v58 = vsel %vm44, %v22, 0
  %v61 = vsel %vm44, %v23, 0
  %63 = vmatpush.xpose.msra.mxu0 0.0
  %64 = vmatpush.xpose.msra.mxu0 0.0
  %65 = vmatpush.xpose.msra.mxu0 0.0
  %66 = vmatpush.xpose.msra.mxu0 0.0
  %67 = vmatpush.xpose.msra.mxu0 0.0
  %68 = vmatpush.xpose.msra.mxu0 0.0
  %69 = vmatpush.xpose.msra.mxu0 0.0
  %70 = vmatpush.xpose.msra.mxu0 0.0
  %71 = vmatpush.xpose.msra.mxu0 0.0
  %72 = vmatpush.xpose.msra.mxu0 0.0
  %73 = vmatpush.xpose.msra.mxu0 0.0
  %74 = vmatpush.xpose.msra.mxu0 0.0
  %75 = vmatpush.xpose.msra.mxu0 0.0
  %76 = vmatpush.xpose.msra.mxu0 0.0
  %77 = vmatpush.xpose.msra.mxu0 %v61
  %78 = vmatpush.xpose.msra.mxu0 %v58
  %79 = vmatmul.f32.gmra.mxu0 %v46
  %v80 = vpop.f32.mrf.mxu0
  %v81 = vadd.f32 %v27, %v80
  %82 = vmatmul.f32.gmra.mxu0 %v49
  %v83 = vpop.f32.mrf.mxu0
  %v84 = vadd.f32 %v32, %v83
  %85 = vmatmul.f32.gmra.mxu0 %v52
  %v86 = vpop.f32.mrf.mxu0
  %v87 = vadd.f32 %v37, %v86
  %88 = vmatmul.f32.gmra.mxu0 %v55
  %v89 = vpop.f32.mrf.mxu0
  %v90 = vadd.f32 %v42, %v89
  %91 = vdwg.mxu0
  %vm92 = vcmask 130048
  %93 = vst.msk [vmem:[%s3] sm:$0xff] %vm92, %v81
  %94 = vst.msk [vmem:[%s3 + $0x8] sm:$0xff] %vm92, %v84
  %95 = vst.msk [vmem:[%s3 + $0x10] sm:$0xff] %vm92, %v87
  %96 = vst.msk [vmem:[%s3 + $0x18] sm:$0xff] %vm92, %v90
  %s97 = scalar_lea.vmem %s0, 16
  %v98 = vld [vmem:[%s97] sm:$0xff]
  %v99 = vld [vmem:[%s97 + $0x8] sm:$0xff]
  %v101 = vsel %vm44, %v98, 0
  %v104 = vsel %vm44, %v99, 0
  %106 = vmatpush.xpose.msra.mxu0 0.0
  %107 = vmatpush.xpose.msra.mxu0 0.0
  %108 = vmatpush.xpose.msra.mxu0 0.0
  %109 = vmatpush.xpose.msra.mxu0 0.0
  %110 = vmatpush.xpose.msra.mxu0 0.0
  %111 = vmatpush.xpose.msra.mxu0 0.0
  %112 = vmatpush.xpose.msra.mxu0 0.0
  %113 = vmatpush.xpose.msra.mxu0 0.0
  %114 = vmatpush.xpose.msra.mxu0 0.0
  %115 = vmatpush.xpose.msra.mxu0 0.0
  %116 = vmatpush.xpose.msra.mxu0 0.0
  %117 = vmatpush.xpose.msra.mxu0 0.0
  %118 = vmatpush.xpose.msra.mxu0 0.0
  %119 = vmatpush.xpose.msra.mxu0 0.0
  %120 = vmatpush.xpose.msra.mxu0 %v104
  %121 = vmatpush.xpose.msra.mxu0 %v101
  %122 = vmatmul.f32.gmra.mxu0 %v46
  %v123 = vpop.f32.mrf.mxu0
  %v124 = vadd.f32 %v27, %v123
  %125 = vmatmul.f32.gmra.mxu0 %v49
  %v126 = vpop.f32.mrf.mxu0
  %v127 = vadd.f32 %v32, %v126
  %128 = vmatmul.f32.gmra.mxu0 %v52
  %v129 = vpop.f32.mrf.mxu0
  %v130 = vadd.f32 %v37, %v129
  %131 = vmatmul.f32.gmra.mxu0 %v55
  %v132 = vpop.f32.mrf.mxu0
  %v133 = vadd.f32 %v42, %v132
  %134 = vdwg.mxu0
  %s135 = scalar_lea.vmem %s3, 32
  %136 = vst.msk [vmem:[%s135] sm:$0xff] %vm92, %v124
  %137 = vst.msk [vmem:[%s135 + $0x8] sm:$0xff] %vm92, %v127
  %138 = vst.msk [vmem:[%s135 + $0x10] sm:$0xff] %vm92, %v130
  %139 = vst.msk [vmem:[%s135 + $0x18] sm:$0xff] %vm92, %v133
  // Predicated region
  $region14: #{tpu_custom_call.1} parent=0 // pred_check
    _
  $region15: #{tpu_custom_call.1} parent=0 // pred_check_branch
    %141 = sbr.rel (0) target = $region17
  $region16: #{tpu_custom_call.1} parent=0 // pred_region
    _
  $region17: #{tpu_custom_call.1} parent=0 // pred_fallthru
    _
  // Predicated region
  $region18: #{tpu_custom_call.1} parent=0 // pred_check
    _
  $region19: #{tpu_custom_call.1} parent=0 // pred_check_branch
    %143 = sbr.rel (0) target = $region21
  $region20: #{tpu_custom_call.1} parent=0 // pred_region
    _
  $region21: #{tpu_custom_call.1} parent=0 // pred_fallthru
    _

</llo_original>
